<compile_context>
chip_gen: v7x
topology: tpu7x:2x2x1
jax: 0.10.0
libtpu: 0.0.40
codegen_flags: <defaults>
</compile_context>

<pallas_src>
import jax
import jax.numpy as jnp
from jax.experimental import pallas as pl
from jax.experimental.pallas import tpu as pltpu


def _pick_batch_tile(batch, bytes_per_row, budget_bytes=8 * 1024 * 1024):
    """Largest batch tile (a divisor of `batch` that is a multiple of 8, or `batch`
    itself) whose double-buffered per-step input working set fits the budget."""
    cands = {batch} | {t for t in range(8, batch, 8) if batch % t == 0}
    for tb in sorted(cands, reverse=True):
        if 2 * tb * bytes_per_row <= budget_bytes:  # x2 for double buffering
            return tb
    return min(cands)


def _make_fused_loss_kernel(n_pairs, batch, total_feat, alpha1, alpha2):
    """Build the fused CE+CE+MSE kernel. Constants are baked in via closure."""
    ce_scale = float(alpha1) / float(batch)                 # mean-over-batch * alpha1
    mse_scale = float(alpha2) / float(batch * total_feat)   # mean-over-elems * alpha2

    def kernel(ori_ref, adv_ref, lab_ref, *rest):
        # rest = (mid_ori_0, mid_adv_0, mid_ori_1, mid_adv_1, ..., out_ref)
        mid_refs = rest[:-1]
        out_ref = rest[-1]           # SMEM f32[2]: [ce_sum_acc, sse_acc]
        step = pl.program_id(0)

        @pl.when(step == 0)
        def _init():
            out_ref[0] = jnp.float32(0.0)
            out_ref[1] = jnp.float32(0.0)

        labels = lab_ref[...]                                     # [tb, 1] int32

        def ce_row_sum(logit_ref):
            logits = logit_ref[...].astype(jnp.float32)           # [tb, C]
            m = jnp.max(logits, axis=-1, keepdims=True)
            lse = m + jnp.log(jnp.sum(jnp.exp(logits - m), axis=-1, keepdims=True))
            col = jax.lax.broadcasted_iota(jnp.int32, logits.shape, 1)
            onehot = (col == labels).astype(jnp.float32)
            picked = jnp.sum(onehot * logits, axis=-1, keepdims=True)
            return jnp.sum(lse - picked)                          # scalar f32

        ce_partial = ce_row_sum(ori_ref) + ce_row_sum(adv_ref)

        sse_partial = jnp.float32(0.0)
        for i in range(n_pairs):
            a = mid_refs[2 * i][...].astype(jnp.float32)
            b = mid_refs[2 * i + 1][...].astype(jnp.float32)
            d = a - b
            sse_partial = sse_partial + jnp.sum(d * d)

        out_ref[0] = out_ref[0] + ce_partial
        out_ref[1] = out_ref[1] + sse_partial

        @pl.when(step == pl.num_programs(0) - 1)
        def _finalize():
            out_ref[0] = out_ref[0] * jnp.float32(ce_scale)
            out_ref[1] = out_ref[1] * jnp.float32(mse_scale)

    return kernel


class Lossfunc:
    def __init__(self, alpha1, alpha2):
        self.alpha1 = float(alpha1)
        self.alpha2 = float(alpha2)

    def __call__(self, pred_ori, pred_advs, labels, midlayer_ori, midlayer_advs):
        B, C = pred_ori.shape
        n_pairs = len(midlayer_ori)
        assert n_pairs >= 1 and len(midlayer_advs) == n_pairs

        # Flatten each feature map to [B, F_i]; MSE over torch.cat(dim=1) of the
        # originals equals the mean of squared diffs over all these elements.
        mids_a = [jnp.reshape(a, (B, -1)) for a in midlayer_ori]
        mids_b = [jnp.reshape(b, (B, -1)) for b in midlayer_advs]
        feat_widths = [int(a.shape[1]) for a in mids_a]
        total_feat = sum(feat_widths)

        labels2d = labels.astype(jnp.int32).reshape(B, 1)

        # Per-batch-row bytes across all batch-tiled inputs (for tile sizing).
        bytes_per_row = (
            C * pred_ori.dtype.itemsize
            + C * pred_advs.dtype.itemsize
            + 4  # labels int32
            + sum(f * (a.dtype.itemsize + b.dtype.itemsize)
                  for f, a, b in zip(feat_widths, mids_a, mids_b))
        )
        tb = _pick_batch_tile(B, bytes_per_row)
        grid = (B // tb,)

        in_specs = [
            pl.BlockSpec((tb, C), lambda i: (i, 0)),   # pred_ori
            pl.BlockSpec((tb, C), lambda i: (i, 0)),   # pred_advs
            pl.BlockSpec((tb, 1), lambda i: (i, 0)),   # labels
        ]
        operands = [pred_ori, pred_advs, labels2d]
        for f, a, b in zip(feat_widths, mids_a, mids_b):
            in_specs.append(pl.BlockSpec((tb, f), lambda i: (i, 0)))
            in_specs.append(pl.BlockSpec((tb, f), lambda i: (i, 0)))
            operands.append(a)
            operands.append(b)

        kernel = _make_fused_loss_kernel(
            n_pairs, B, total_feat, self.alpha1, self.alpha2
        )

        out = pl.pallas_call(
            kernel,
            out_shape=jax.ShapeDtypeStruct((2,), jnp.float32),
            grid=grid,
            in_specs=in_specs,
            # Scalar results accumulate in SMEM (no masked 1-lane VMEM stores).
            out_specs=pl.BlockSpec(memory_space=pltpu.MemorySpace.SMEM),
            compiler_params=pltpu.CompilerParams(
                dimension_semantics=("arbitrary",),     # reduction into shared acc
                vmem_limit_bytes=32 * 1024 * 1024,      # explicit: safe on v7x 64 MiB
            ),
        )(*operands)
        return out[0], out[1]


if __name__ == "__main__":
    key = jax.random.PRNGKey(0)
    k1, k2, k3, k4, k5, k6, k7 = jax.random.split(key, 7)

    B, C = 8, 16           # batch, num classes
    F1, F2 = 32, 64        # mid-layer feature widths

    pred_ori = jax.random.normal(k1, (B, C), dtype=jnp.float32)
    pred_advs = jax.random.normal(k2, (B, C), dtype=jnp.float32)
    labels = jax.random.randint(k3, (B,), 0, C, dtype=jnp.int32)

    midlayer_ori = [
        jax.random.normal(k4, (B, F1), dtype=jnp.float32),
        jax.random.normal(k5, (B, F2), dtype=jnp.float32),
    ]
    midlayer_advs = [
        jax.random.normal(k6, (B, F1), dtype=jnp.float32),
        jax.random.normal(k7, (B, F2), dtype=jnp.float32),
    ]

    lossfn = Lossfunc(alpha1=0.7, alpha2=0.3)
    out1, out2 = lossfn(pred_ori, pred_advs, labels, midlayer_ori, midlayer_advs)
    jax.block_until_ready((out1, out2))

    # Reference check in plain JAX.
    def ce_ref(logits, lab):
        ls = jax.nn.log_softmax(logits, axis=-1)
        return -jnp.mean(ls[jnp.arange(logits.shape[0]), lab])

    ref1 = 0.7 * (ce_ref(pred_ori, labels) + ce_ref(pred_advs, labels))
    v1 = jnp.concatenate(midlayer_ori, axis=1)
    v2 = jnp.concatenate(midlayer_advs, axis=1)
    ref2 = 0.3 * jnp.mean((v1 - v2) ** 2)

    assert jnp.allclose(out1, ref1, rtol=1e-5, atol=1e-5), (out1, ref1)
    assert jnp.allclose(out2, ref2, rtol=1e-5, atol=1e-5), (out2, ref2)

    print("KERNEL_OK")
</pallas_src>

<mosaic_0001>
module attributes {stable_mosaic.version = 11 : i64} {
  func.func @kernel(%arg0: i32, %arg1: memref<8x16xf32, #tpu.memory_space<vmem>>, %arg2: memref<8x16xf32, #tpu.memory_space<vmem>>, %arg3: memref<8x1xi32, #tpu.memory_space<vmem>>, %arg4: memref<8x32xf32, #tpu.memory_space<vmem>>, %arg5: memref<8x32xf32, #tpu.memory_space<vmem>>, %arg6: memref<8x64xf32, #tpu.memory_space<vmem>>, %arg7: memref<8x64xf32, #tpu.memory_space<vmem>>, %arg8: memref<2xf32, #tpu.memory_space<smem>>) attributes {dimension_semantics = [#tpu.dimension_semantics<arbitrary>], iteration_bounds = array<i64: 1>, scalar_prefetch = 0 : i64, scratch_operands = 0 : i64, tpu.core_type = #tpu.core_type<tc>, window_params = [{transform_indices = @transform_0, window_bounds = array<i64: 8, 16>}, {transform_indices = @transform_1, window_bounds = array<i64: 8, 16>}, {transform_indices = @transform_2, window_bounds = array<i64: 8, 1>}, {transform_indices = @transform_3, window_bounds = array<i64: 8, 32>}, {transform_indices = @transform_4, window_bounds = array<i64: 8, 32>}, {transform_indices = @transform_5, window_bounds = array<i64: 8, 64>}, {transform_indices = @transform_6, window_bounds = array<i64: 8, 64>}, {transform_indices = @transform_7, window_bounds = array<i64: 2>}]} {
    %c0_i32 = arith.constant 0 : i32
    %0 = arith.cmpi eq, %arg0, %c0_i32 : i32
    %1 = arith.extui %0 : i1 to i32
    %c0_i32_0 = arith.constant 0 : i32
    %2 = arith.cmpi ne, %1, %c0_i32_0 : i32
    scf.if %2 {
      %cst_29 = arith.constant 0.000000e+00 : f32
      %c0_30 = arith.constant 0 : index
      %78 = memref.load %arg8[%c0_30] : memref<2xf32, #tpu.memory_space<smem>>
      memref.store %cst_29, %arg8[%c0_30] : memref<2xf32, #tpu.memory_space<smem>>
      %cst_31 = arith.constant 0.000000e+00 : f32
      %c1_32 = arith.constant 1 : index
      %79 = memref.load %arg8[%c1_32] : memref<2xf32, #tpu.memory_space<smem>>
      memref.store %cst_31, %arg8[%c1_32] : memref<2xf32, #tpu.memory_space<smem>>
    } else {
    }
    %c0 = arith.constant 0 : index
    %c0_1 = arith.constant 0 : index
    %3 = vector.load %arg3[%c0, %c0_1] : memref<8x1xi32, #tpu.memory_space<vmem>>, vector<8x1xi32>
    %c0_2 = arith.constant 0 : index
    %c0_3 = arith.constant 0 : index
    %4 = vector.load %arg1[%c0_2, %c0_3] : memref<8x16xf32, #tpu.memory_space<vmem>>, vector<8x16xf32>
    %cst = arith.constant dense<0xFF800000> : vector<8xf32>
    %5 = vector.multi_reduction <maximumf>, %4, %cst [1] : vector<8x16xf32> to vector<8xf32>
    %6 = vector.shape_cast %5 : vector<8xf32> to vector<8x1xf32>
    %7 = vector.broadcast %6 : vector<8x1xf32> to vector<8x16xf32>
    %8 = arith.subf %4, %7 : vector<8x16xf32>
    %9 = math.exp %8 : vector<8x16xf32>
    %cst_4 = arith.constant dense<0.000000e+00> : vector<8xf32>
    %10 = vector.multi_reduction <add>, %9, %cst_4 [1] : vector<8x16xf32> to vector<8xf32>
    %11 = vector.shape_cast %10 : vector<8xf32> to vector<8x1xf32>
    %12 = math.log %11 : vector<8x1xf32>
    %13 = arith.addf %6, %12 : vector<8x1xf32>
    %14 = tpu.iota {dimensions = array<i32: 1>} : vector<8x16xi32>
    %15 = vector.broadcast %3 : vector<8x1xi32> to vector<8x16xi32>
    %16 = arith.cmpi eq, %14, %15 : vector<8x16xi32>
    %17 = arith.extui %16 : vector<8x16xi1> to vector<8x16xi32>
    %18 = arith.sitofp %17 : vector<8x16xi32> to vector<8x16xf32>
    %19 = arith.mulf %18, %4 : vector<8x16xf32>
    %cst_5 = arith.constant dense<0.000000e+00> : vector<8xf32>
    %20 = vector.multi_reduction <add>, %19, %cst_5 [1] : vector<8x16xf32> to vector<8xf32>
    %21 = vector.shape_cast %20 : vector<8xf32> to vector<8x1xf32>
    %22 = arith.subf %13, %21 : vector<8x1xf32>
    %23 = vector.shape_cast %22 : vector<8x1xf32> to vector<1x8x1xf32>
    %cst_6 = arith.constant dense<0.000000e+00> : vector<1xf32>
    %24 = vector.multi_reduction <add>, %23, %cst_6 [1, 2] : vector<1x8x1xf32> to vector<1xf32>
    %25 = vector.shape_cast %24 : vector<1xf32> to vector<1x1x1xf32>
    %26 = vector.extract %25[0, 0, 0] : f32 from vector<1x1x1xf32>
    %c0_7 = arith.constant 0 : index
    %c0_8 = arith.constant 0 : index
    %27 = vector.load %arg2[%c0_7, %c0_8] : memref<8x16xf32, #tpu.memory_space<vmem>>, vector<8x16xf32>
    %cst_9 = arith.constant dense<0xFF800000> : vector<8xf32>
    %28 = vector.multi_reduction <maximumf>, %27, %cst_9 [1] : vector<8x16xf32> to vector<8xf32>
    %29 = vector.shape_cast %28 : vector<8xf32> to vector<8x1xf32>
    %30 = vector.broadcast %29 : vector<8x1xf32> to vector<8x16xf32>
    %31 = arith.subf %27, %30 : vector<8x16xf32>
    %32 = math.exp %31 : vector<8x16xf32>
    %cst_10 = arith.constant dense<0.000000e+00> : vector<8xf32>
    %33 = vector.multi_reduction <add>, %32, %cst_10 [1] : vector<8x16xf32> to vector<8xf32>
    %34 = vector.shape_cast %33 : vector<8xf32> to vector<8x1xf32>
    %35 = math.log %34 : vector<8x1xf32>
    %36 = arith.addf %29, %35 : vector<8x1xf32>
    %37 = tpu.iota {dimensions = array<i32: 1>} : vector<8x16xi32>
    %38 = vector.broadcast %3 : vector<8x1xi32> to vector<8x16xi32>
    %39 = arith.cmpi eq, %37, %38 : vector<8x16xi32>
    %40 = arith.extui %39 : vector<8x16xi1> to vector<8x16xi32>
    %41 = arith.sitofp %40 : vector<8x16xi32> to vector<8x16xf32>
    %42 = arith.mulf %41, %27 : vector<8x16xf32>
    %cst_11 = arith.constant dense<0.000000e+00> : vector<8xf32>
    %43 = vector.multi_reduction <add>, %42, %cst_11 [1] : vector<8x16xf32> to vector<8xf32>
    %44 = vector.shape_cast %43 : vector<8xf32> to vector<8x1xf32>
    %45 = arith.subf %36, %44 : vector<8x1xf32>
    %46 = vector.shape_cast %45 : vector<8x1xf32> to vector<1x8x1xf32>
    %cst_12 = arith.constant dense<0.000000e+00> : vector<1xf32>
    %47 = vector.multi_reduction <add>, %46, %cst_12 [1, 2] : vector<1x8x1xf32> to vector<1xf32>
    %48 = vector.shape_cast %47 : vector<1xf32> to vector<1x1x1xf32>
    %49 = vector.extract %48[0, 0, 0] : f32 from vector<1x1x1xf32>
    %50 = arith.addf %26, %49 : f32
    %c0_13 = arith.constant 0 : index
    %c0_14 = arith.constant 0 : index
    %51 = vector.load %arg4[%c0_13, %c0_14] : memref<8x32xf32, #tpu.memory_space<vmem>>, vector<8x32xf32>
    %c0_15 = arith.constant 0 : index
    %c0_16 = arith.constant 0 : index
    %52 = vector.load %arg5[%c0_15, %c0_16] : memref<8x32xf32, #tpu.memory_space<vmem>>, vector<8x32xf32>
    %53 = arith.subf %51, %52 : vector<8x32xf32>
    %54 = arith.mulf %53, %53 : vector<8x32xf32>
    %55 = vector.shape_cast %54 : vector<8x32xf32> to vector<1x8x32xf32>
    %cst_17 = arith.constant dense<0.000000e+00> : vector<1xf32>
    %56 = vector.multi_reduction <add>, %55, %cst_17 [1, 2] : vector<1x8x32xf32> to vector<1xf32>
    %57 = vector.shape_cast %56 : vector<1xf32> to vector<1x1x1xf32>
    %58 = vector.extract %57[0, 0, 0] : f32 from vector<1x1x1xf32>
    %cst_18 = arith.constant 0.000000e+00 : f32
    %59 = arith.addf %cst_18, %58 : f32
    %c0_19 = arith.constant 0 : index
    %c0_20 = arith.constant 0 : index
    %60 = vector.load %arg6[%c0_19, %c0_20] : memref<8x64xf32, #tpu.memory_space<vmem>>, vector<8x64xf32>
    %c0_21 = arith.constant 0 : index
    %c0_22 = arith.constant 0 : index
    %61 = vector.load %arg7[%c0_21, %c0_22] : memref<8x64xf32, #tpu.memory_space<vmem>>, vector<8x64xf32>
    %62 = arith.subf %60, %61 : vector<8x64xf32>
    %63 = arith.mulf %62, %62 : vector<8x64xf32>
    %64 = vector.shape_cast %63 : vector<8x64xf32> to vector<1x8x64xf32>
    %cst_23 = arith.constant dense<0.000000e+00> : vector<1xf32>
    %65 = vector.multi_reduction <add>, %64, %cst_23 [1, 2] : vector<1x8x64xf32> to vector<1xf32>
    %66 = vector.shape_cast %65 : vector<1xf32> to vector<1x1x1xf32>
    %67 = vector.extract %66[0, 0, 0] : f32 from vector<1x1x1xf32>
    %68 = arith.addf %59, %67 : f32
    %c0_24 = arith.constant 0 : index
    %69 = memref.load %arg8[%c0_24] : memref<2xf32, #tpu.memory_space<smem>>
    %70 = arith.addf %69, %50 : f32
    %c0_25 = arith.constant 0 : index
    %71 = memref.load %arg8[%c0_25] : memref<2xf32, #tpu.memory_space<smem>>
    memref.store %70, %arg8[%c0_25] : memref<2xf32, #tpu.memory_space<smem>>
    %c1 = arith.constant 1 : index
    %72 = memref.load %arg8[%c1] : memref<2xf32, #tpu.memory_space<smem>>
    %73 = arith.addf %72, %68 : f32
    %c1_26 = arith.constant 1 : index
    %74 = memref.load %arg8[%c1_26] : memref<2xf32, #tpu.memory_space<smem>>
    memref.store %73, %arg8[%c1_26] : memref<2xf32, #tpu.memory_space<smem>>
    %c0_i32_27 = arith.constant 0 : i32
    %75 = arith.cmpi eq, %arg0, %c0_i32_27 : i32
    %76 = arith.extui %75 : i1 to i32
    %c0_i32_28 = arith.constant 0 : i32
    %77 = arith.cmpi ne, %76, %c0_i32_28 : i32
    scf.if %77 {
      %c0_29 = arith.constant 0 : index
      %78 = memref.load %arg8[%c0_29] : memref<2xf32, #tpu.memory_space<smem>>
      %cst_30 = arith.constant 0.0874999985 : f32
      %79 = arith.mulf %78, %cst_30 : f32
      %c0_31 = arith.constant 0 : index
      %80 = memref.load %arg8[%c0_31] : memref<2xf32, #tpu.memory_space<smem>>
      memref.store %79, %arg8[%c0_31] : memref<2xf32, #tpu.memory_space<smem>>
      %c1_32 = arith.constant 1 : index
      %81 = memref.load %arg8[%c1_32] : memref<2xf32, #tpu.memory_space<smem>>
      %cst_33 = arith.constant 3.906250e-04 : f32
      %82 = arith.mulf %81, %cst_33 : f32
      %c1_34 = arith.constant 1 : index
      %83 = memref.load %arg8[%c1_34] : memref<2xf32, #tpu.memory_space<smem>>
      memref.store %82, %arg8[%c1_34] : memref<2xf32, #tpu.memory_space<smem>>
    } else {
    }
    return
  }
  func.func @transform_0(%arg0: i32) -> (i32, i32) {
    %c0_i32 = arith.constant 0 : i32
    %c0_i32_0 = arith.constant 0 : i32
    return %arg0, %c0_i32 : i32, i32
  }
  func.func @transform_1(%arg0: i32) -> (i32, i32) {
    %c0_i32 = arith.constant 0 : i32
    %c0_i32_0 = arith.constant 0 : i32
    return %arg0, %c0_i32 : i32, i32
  }
  func.func @transform_2(%arg0: i32) -> (i32, i32) {
    %c0_i32 = arith.constant 0 : i32
    %c0_i32_0 = arith.constant 0 : i32
    return %arg0, %c0_i32 : i32, i32
  }
  func.func @transform_3(%arg0: i32) -> (i32, i32) {
    %c0_i32 = arith.constant 0 : i32
    %c0_i32_0 = arith.constant 0 : i32
    return %arg0, %c0_i32 : i32, i32
  }
  func.func @transform_4(%arg0: i32) -> (i32, i32) {
    %c0_i32 = arith.constant 0 : i32
    %c0_i32_0 = arith.constant 0 : i32
    return %arg0, %c0_i32 : i32, i32
  }
  func.func @transform_5(%arg0: i32) -> (i32, i32) {
    %c0_i32 = arith.constant 0 : i32
    %c0_i32_0 = arith.constant 0 : i32
    return %arg0, %c0_i32 : i32, i32
  }
  func.func @transform_6(%arg0: i32) -> (i32, i32) {
    %c0_i32 = arith.constant 0 : i32
    %c0_i32_0 = arith.constant 0 : i32
    return %arg0, %c0_i32 : i32, i32
  }
  func.func @transform_7(%arg0: i32) -> i32 {
    %c0_i32 = arith.constant 0 : i32
    %c0_i32_0 = arith.constant 0 : i32
    return %c0_i32 : i32
  }
}

</mosaic_0001>

<llo_original>
// kernel: tpu_custom_call.1
$region0: #{tpu_custom_call.1}
  #allocation0 [shape = 'u32[]', space=smem, size = 0x4, offset = 0x4, fixed_abs, tag = 'smem constant byte address 0x4 - core index']
  #allocation1 [shape = 'u32[144,128]{1,0:T(1,128)}', space=vmem, size = 0x12000, scoped, tag = 'internal scratch']
  %s0 = inlined_call_operand.vmem [shape: f32[8,16], index: 0, kind: input, shape index: {}]
  %s1 = inlined_call_operand.hbm [shape: f32[8,16], index: 1, kind: input, shape index: {}]
  %s2 = inlined_call_operand.vmem [shape: s32[8,1], index: 2, kind: input, shape index: {}]
  %s3 = inlined_call_operand.vmem [shape: f32[8,32], index: 3, kind: input, shape index: {}]
  %s4 = inlined_call_operand.vmem [shape: f32[8,32], index: 4, kind: input, shape index: {}]
  %s5 = inlined_call_operand.hbm [shape: f32[8,64], index: 5, kind: input, shape index: {}]
  %s6 = inlined_call_operand.hbm [shape: f32[8,64], index: 6, kind: input, shape index: {}]
  %s7 = inlined_call_operand.hbm [shape: f32[2], index: 7, kind: output, shape index: {}]
  %s8 = sld [smem:[#allocation0]]
  $region58: #{tpu_custom_call.1} parent=0
    _
  %s10 = ssub.s32 1, %s8
  %s11 = scalar_select 0, %s10, %s8
  $region1: #{tpu_custom_call.1} parent=0
    #allocation2 [shape = 'u8[4096]{0}', space=vmem, size = 0x1000, scoped, tag = 'input window, operand 1, single buffered']
    #allocation3 [shape = 's32[1]{0}', space=sflag, size = 0x4, scoped, tag = 'scoped memory for tpu_custom_call.1']
    #allocation4 [shape = 's32[1]{0}', space=sflag, size = 0x4, scoped, tag = 'scoped memory for tpu_custom_call.1']
    #allocation5 [shape = 'u8[4096]{0}', space=vmem, size = 0x1000, scoped, tag = 'input window, operand 5, single buffered']
    #allocation6 [shape = 's32[1]{0}', space=sflag, size = 0x4, scoped, tag = 'scoped memory for tpu_custom_call.1']
    #allocation7 [shape = 'u8[4096]{0}', space=vmem, size = 0x1000, scoped, tag = 'input window, operand 6, single buffered']
    #allocation8 [shape = 'u8[512]{0}', space=smem, size = 0x200, scoped, tag = 'output window, operand 0, single buffered']
    %12 = vsyncpa [#allocation3], 0
    %13 = vsyncpa [#allocation6], 0
    %14 = vsyncpa [#allocation4], 0
    // Predicated region
    $region2: #{tpu_custom_call.1} parent=1 // pred_check
      _
    $region3: #{tpu_custom_call.1} parent=1 // pred_check_branch
      %16 = sbr.rel (0) target = $region5
    $region4: #{tpu_custom_call.1} parent=1 // pred_region
      _
    $region5: #{tpu_custom_call.1} parent=1 // pred_fallthru
      _
    // Predicated region
    $region6: #{tpu_custom_call.1} parent=1 // pred_check
      _
    $region7: #{tpu_custom_call.1} parent=1 // pred_check_branch
      %18 = sbr.rel (0) target = $region9
    $region8: #{tpu_custom_call.1} parent=1 // pred_region
      %s20 = ssub.s32 128, 128
      %21 = vsyncadd [#allocation3], %s20
      %s23 = sshll.u32 [#allocation2], 4
      %s24 = int_to_ptr.vmem [resolvable:$true] %s23
      %26 = dma.hbm_to_vmem [thread:$0]  %s1, 128, %s24, [#allocation3]
    $region9: #{tpu_custom_call.1} parent=1 // pred_fallthru
      _
    // Predicated region
    $region10: #{tpu_custom_call.1} parent=1 // pred_check
      _
    $region11: #{tpu_custom_call.1} parent=1 // pred_check_branch
      %28 = sbr.rel (0) target = $region13
    $region12: #{tpu_custom_call.1} parent=1 // pred_region
      _
    $region13: #{tpu_custom_call.1} parent=1 // pred_fallthru
      _
    // Predicated region
    $region14: #{tpu_custom_call.1} parent=1 // pred_check
      _
    $region15: #{tpu_custom_call.1} parent=1 // pred_check_branch
      %30 = sbr.rel (0) target = $region17
    $region16: #{tpu_custom_call.1} parent=1 // pred_region
      _
    $region17: #{tpu_custom_call.1} parent=1 // pred_fallthru
      _
    // Predicated region
    $region18: #{tpu_custom_call.1} parent=1 // pred_check
      _
    $region19: #{tpu_custom_call.1} parent=1 // pred_check_branch
      %32 = sbr.rel (0) target = $region21
    $region20: #{tpu_custom_call.1} parent=1 // pred_region
      _
    $region21: #{tpu_custom_call.1} parent=1 // pred_fallthru
      _
    // Predicated region
    $region22: #{tpu_custom_call.1} parent=1 // pred_check
      _
    $region23: #{tpu_custom_call.1} parent=1 // pred_check_branch
      %34 = sbr.rel (0) target = $region25
    $region24: #{tpu_custom_call.1} parent=1 // pred_region
      %s36 = ssub.s32 128, 128
      %37 = vsyncadd [#allocation6], %s36
      %s39 = sshll.u32 [#allocation5], 4
      %s40 = int_to_ptr.vmem [resolvable:$true] %s39
      %42 = dma.hbm_to_vmem [thread:$0]  %s5, 128, %s40, [#allocation6]
    $region25: #{tpu_custom_call.1} parent=1 // pred_fallthru
      _
    // Predicated region
    $region26: #{tpu_custom_call.1} parent=1 // pred_check
      _
    $region27: #{tpu_custom_call.1} parent=1 // pred_check_branch
      %44 = sbr.rel (0) target = $region29
    $region28: #{tpu_custom_call.1} parent=1 // pred_region
      %s46 = ssub.s32 128, 128
      %47 = vsyncadd [#allocation6], %s46
      %s49 = sshll.u32 [#allocation7], 4
      %s50 = int_to_ptr.vmem [resolvable:$true] %s49
      %52 = dma.hbm_to_vmem [thread:$0]  %s6, 128, %s50, [#allocation6]
    $region29: #{tpu_custom_call.1} parent=1 // pred_fallthru
      _
    // Predicated region
    $region30: #{tpu_custom_call.1} parent=1 // pred_check
      _
    $region31: #{tpu_custom_call.1} parent=1 // pred_check_branch
      %54 = sbr.rel (0) target = $region33
    $region32: #{tpu_custom_call.1} parent=1 // pred_region
      %55 = dma.done [#allocation3], 128
    $region33: #{tpu_custom_call.1} parent=1 // pred_fallthru
      _
    // Predicated region
    $region34: #{tpu_custom_call.1} parent=1 // pred_check
      _
    $region35: #{tpu_custom_call.1} parent=1 // pred_check_branch
      %57 = sbr.rel (0) target = $region37
    $region36: #{tpu_custom_call.1} parent=1 // pred_region
      %58 = dma.done [#allocation6], 128
    $region37: #{tpu_custom_call.1} parent=1 // pred_fallthru
      _
    // Predicated region
    $region38: #{tpu_custom_call.1} parent=1 // pred_check
      _
    $region39: #{tpu_custom_call.1} parent=1 // pred_check_branch
      %60 = sbr.rel (0) target = $region41
    $region40: #{tpu_custom_call.1} parent=1 // pred_region
      %61 = dma.done [#allocation6], 128
    $region41: #{tpu_custom_call.1} parent=1 // pred_fallthru
      _
    %p62 = scmp.eq.s32.totalorder 0, 0
    // Predicated region
    $region42: #{tpu_custom_call.1} parent=1 // pred_check
      %p63 = pneg %p62
    $region43: #{tpu_custom_call.1} parent=1 // pred_check_branch
      %65 = sbr.rel (%p63) target = $region45
    $region44: #{tpu_custom_call.1} parent=1 // pred_region
      %s66 = scalar_lea.smem [#allocation8], 0
      %67 = sst [smem:[%s66]] 0.0
      %s68 = scalar_lea.smem [#allocation8], 1
      %69 = sst [smem:[%s68]] 0.0
    $region45: #{tpu_custom_call.1} parent=1 // pred_fallthru
      _
    %v70 = vld [vmem:[%s2] sm:$0xff]
    %v71 = vld [vmem:[%s0] sm:$0xff]
    %vm72 = vcmask 130048
    %v73 = vsel %vm72, %v71, -inf
    %74 = vmax.xlane.f32.xlu0 %v73
    %v75 = vpop.xlane.xlu0 %74
    %v76 = vsub.f32 %v71, %v75
    %v77 = vmul.f32 %v76, 1.442695
    %v78 = vpow.pop %v77
    %v79 = vsel %vm72, %v78, 0.0
    %80 = vadd.xlane.f32.xlu0 %v79
    %v81 = vpop.xlane.xlu0 %80
    %v82 = vlog2.pop %v81
    %v83 = vmul.f32 %v82, 0.6931472
    %v84 = vadd.f32 %v75, %v83
    %v85 = vlaneseq
    %v86 = vand.u32 %v85, 127
    %87 = vset.pattern.permute.xlu0 0
    %88 = vperm.xlu0 %87, %v70
    %v89 = vpop.permute.xlu0 %88
    %vm90 = vcmp.eq.s32.totalorder %v86, %v89
    %v91 = vsel %vm90, 1, 0
    %v92 = vcvt.s32.f32 %v91
    %v93 = vmul.f32 %v92, %v71
    %v94 = vsel %vm72, %v93, 0.0
    %95 = vadd.xlane.f32.xlu0 %v94
    %v96 = vpop.xlane.xlu0 %95
    %v97 = vsub.f32 %v84, %v96
    %vm98 = vcmask 7168
    %v99 = vsel %vm98, %v97, 0.0
    %100 = vadd.xlane.f32.xlu0 %v99
    %v101 = vpop.xlane.xlu0 %100
    %v102 = vrot.slane %v101, 4
    %v103 = vadd.f32 %v101, %v102
    %v104 = vrot.slane %v103, 2
    %v105 = vadd.f32 %v103, %v104
    %v106 = vrot.slane %v105, 1
    %v107 = vadd.f32 %v105, %v106
    %s108 = vtos %v107
    %v109 = vld [vmem:[#allocation2] sm:$0xff]
    %v110 = vsel %vm72, %v109, -inf
    %111 = vmax.xlane.f32.xlu0 %v110
    %v112 = vpop.xlane.xlu0 %111
    %v113 = vsub.f32 %v109, %v112
    %v114 = vmul.f32 %v113, 1.442695
    %v115 = vpow.pop %v114
    %v116 = vsel %vm72, %v115, 0.0
    %117 = vadd.xlane.f32.xlu0 %v116
    %v118 = vpop.xlane.xlu0 %117
    %v119 = vlog2.pop %v118
    %v120 = vmul.f32 %v119, 0.6931472
    %v121 = vadd.f32 %v112, %v120
    %v122 = vmul.f32 %v92, %v109
    %v123 = vsel %vm72, %v122, 0.0
    %124 = vadd.xlane.f32.xlu0 %v123
    %v125 = vpop.xlane.xlu0 %124
    %v126 = vsub.f32 %v121, %v125
    %v127 = vsel %vm98, %v126, 0.0
    %128 = vadd.xlane.f32.xlu0 %v127
    %v129 = vpop.xlane.xlu0 %128
    %v130 = vrot.slane %v129, 4
    %v131 = vadd.f32 %v129, %v130
    %v132 = vrot.slane %v131, 2
    %v133 = vadd.f32 %v131, %v132
    %v134 = vrot.slane %v133, 1
    %v135 = vadd.f32 %v133, %v134
    %s136 = vtos %v135
    %s137 = sadd.f32 %s108, %s136
    %v138 = vld [vmem:[%s3] sm:$0xff]
    %v139 = vld [vmem:[%s4] sm:$0xff]
    %v140 = vsub.f32 %v138, %v139
    %v141 = vmul.f32 %v140, %v140
    %vm142 = vcmask 261120
    %v143 = vsel %vm142, %v141, 0.0
    %144 = vadd.xlane.f32.xlu0 %v143
    %v145 = vpop.xlane.xlu0 %144
    %v146 = vrot.slane %v145, 4
    %v147 = vadd.f32 %v145, %v146
    %v148 = vrot.slane %v147, 2
    %v149 = vadd.f32 %v147, %v148
    %v150 = vrot.slane %v149, 1
    %v151 = vadd.f32 %v149, %v150
    %s152 = vtos %v151
    %s153 = sadd.f32 %s152, 0.0
    %v154 = vld [vmem:[#allocation5] sm:$0xff]
    %v155 = vld [vmem:[#allocation7] sm:$0xff]
    %v156 = vsub.f32 %v154, %v155
    %v157 = vmul.f32 %v156, %v156
    %vm158 = vcmask 523264
    %v159 = vsel %vm158, %v157, 0.0
    %160 = vadd.xlane.f32.xlu0 %v159
    %v161 = vpop.xlane.xlu0 %160
    %v162 = vrot.slane %v161, 4
    %v163 = vadd.f32 %v161, %v162
    %v164 = vrot.slane %v163, 2
    %v165 = vadd.f32 %v163, %v164
    %v166 = vrot.slane %v165, 1
    %v167 = vadd.f32 %v165, %v166
    %s168 = vtos %v167
    %s169 = sadd.f32 %s153, %s168
    %s170 = sld [smem:[#allocation8]]
    %s171 = sadd.f32 %s170, %s137
    %s172 = scalar_lea.smem [#allocation8], 0
    %173 = sst [smem:[%s172]] %s171
    %s174 = sld [smem:[#allocation8 + $0x1]]
    %s175 = sadd.f32 %s174, %s169
    %s176 = scalar_lea.smem [#allocation8], 1
    %177 = sst [smem:[%s176]] %s175
    // Predicated region
    $region46: #{tpu_custom_call.1} parent=1 // pred_check
      %p178 = pneg %p62
    $region47: #{tpu_custom_call.1} parent=1 // pred_check_branch
      %180 = sbr.rel (%p178) target = $region49
    $region48: #{tpu_custom_call.1} parent=1 // pred_region
      %s181 = sld [smem:[#allocation8]]
      %s182 = smul.f32 %s181, 0.0875
      %183 = sst [smem:[%s172]] %s182
      %s184 = sld [smem:[#allocation8 + $0x1]]
      %s185 = smul.f32 %s184, 0.000390625
      %186 = sst [smem:[%s176]] %s185
    $region49: #{tpu_custom_call.1} parent=1 // pred_fallthru
      _
    // Predicated region
    $region50: #{tpu_custom_call.1} parent=1 // pred_check
      _
    $region51: #{tpu_custom_call.1} parent=1 // pred_check_branch
      %188 = sbr.rel (0) target = $region53
    $region52: #{tpu_custom_call.1} parent=1 // pred_region
      %s190 = ssub.s32 16, 16
      %191 = vsyncadd [#allocation4], %s190
      %194 = dma.smem_to_hbm [#allocation8], 16, %s7, [#allocation4]
    $region53: #{tpu_custom_call.1} parent=1 // pred_fallthru
      _
    // Predicated region
    $region54: #{tpu_custom_call.1} parent=1 // pred_check
      _
    $region55: #{tpu_custom_call.1} parent=1 // pred_check_branch
      %196 = sbr.rel (0) target = $region57
    $region56: #{tpu_custom_call.1} parent=1 // pred_region
      %197 = dma.done [#allocation4], 16
    $region57: #{tpu_custom_call.1} parent=1 // pred_fallthru
      _
    %198 = sfence
    %199 = vsyncpa [#allocation3], 1
    %200 = vsyncpa [#allocation6], 1
    %201 = vsyncpa [#allocation4], 1

</llo_original>
